<compile_context>
chip_gen: v7x
topology: tpu7x:2x2x1
jax: 0.10.0
libtpu: 0.0.40
codegen_flags: <defaults>
</compile_context>

<pallas_src>
import functools

import jax
import jax.numpy as jnp
from jax.experimental import pallas as pl
from jax.experimental.pallas import tpu as pltpu


def _round_up(x, m):
    return ((x + m - 1) // m) * m


def deepsurv_kernel(x_ref, w0_ref, b0_ref, wh_ref, bh_ref, wo_ref, bo_ref,
                    out_ref, *, n_hidden_layers):
    """One batch-tile of the DeepSurv MLP.

    x_ref  : (TB, n_input)   f32 (cast to bf16 in-kernel)
    w0_ref : (n_input, H)    bf16    b0_ref : (1, H)    f32
    wh_ref : (L, H, H)       bf16    bh_ref : (L, 1, H) f32
    wo_ref : (1, H)          f32     bo_ref : (1,)      f32 (SMEM)
    out_ref: (1, 1, TB)      f32 (lane-dense slab)
    """
    # First layer: Linear(n_input -> H) + ReLU (dropout is identity in eval).
    # The bf16 cast runs on the VPU and hides under the matmuls.
    x = x_ref[...].astype(jnp.bfloat16)
    h = jnp.dot(x, w0_ref[...], preferred_element_type=jnp.float32)
    h = jnp.maximum(h + b0_ref[...], 0.0)

    # Hidden layers: Linear(H -> H) + ReLU, statically unrolled (L is small).
    # TODO(synk): for n_hidden_layers > ~8 switch to lax.fori_loop over
    #             wh_ref[n]/bh_ref[n] to keep vreg live ranges bounded.
    for n in range(n_hidden_layers):
        h = jnp.dot(h.astype(jnp.bfloat16), wh_ref[n],
                    preferred_element_type=jnp.float32)
        h = jnp.maximum(h + bh_ref[n], 0.0)

    # Output head: Linear(H -> 1) as a VPU multiply + lane reduction (no N=1
    # MXU pass), stored lane-dense into the (1, 1, TB) output slab.
    o = jnp.sum(h * wo_ref[...], axis=-1) + bo_ref[0]
    out_ref[...] = o.reshape(out_ref.shape)


def prepare_params(params_f32):
    """One-time parameter prep (call at load time, NOT per forward):
    cast MXU operands to bf16, keep epilogue operands in f32."""
    w0, b0, wh, bh, wo, bo = params_f32
    return (w0.astype(jnp.bfloat16), b0.astype(jnp.float32),
            wh.astype(jnp.bfloat16), bh.astype(jnp.float32),
            wo.astype(jnp.float32), bo.astype(jnp.float32))


def deepsurv_forward(x, params, *, n_hidden_layers, block_batch=1024):
    """Eval-mode DeepSurv forward. x: (batch, n_input) f32 -> (batch, 1) f32."""
    w0, b0, wh, bh, wo, bo = params
    batch, n_input = x.shape
    hidden_dim = w0.shape[1]
    n_layers = wh.shape[0]
    assert n_layers == n_hidden_layers

    # Batch tile: as large as allowed (amortizes per-step overhead, fills the
    # MXU M dimension), multiple of 8 sublanes.
    tb = _round_up(min(block_batch, batch), 8)
    # v7x megacore: once the batch is large enough that tiles keep >= 128 rows,
    # keep at least 4 tiles so ("parallel",) actually splits work across the
    # 2 TensorCores (harmless on v5e/v6e's single TC).
    if batch >= 4 * 128:
        tb = min(tb, _round_up((batch + 3) // 4, 8))
    padded_batch = _round_up(batch, tb)
    if padded_batch != batch:
        x = jnp.pad(x, ((0, padded_batch - batch), (0, 0)))
    num_tiles = padded_batch // tb
    grid = (num_tiles,)

    def nbytes(a):
        return a.size * a.dtype.itemsize

    # VMEM budget: resident weights/biases (default double-buffered) +
    # double-buffered x/out tiles + slack, clamped to a v7x-safe 56 MiB.
    weight_bytes = 2 * (nbytes(w0) + nbytes(wh) + nbytes(wo)
                        + nbytes(b0) + nbytes(bh))
    io_bytes = 2 * (tb * n_input * 4 + tb * 4)
    vmem_limit = int(min(max(16 << 20, weight_bytes + io_bytes + (4 << 20)),
                         56 << 20))
    assert weight_bytes + io_bytes < (48 << 20), (
        "TODO(synk): model too large for resident weights on v7x; add the "
        "emit_pipeline layer-streaming path.")

    flops = 2 * padded_batch * (n_input * hidden_dim
                                + n_layers * hidden_dim * hidden_dim
                                + hidden_dim)
    bytes_accessed = (padded_batch * n_input * 4 + padded_batch * 4
                      + nbytes(w0) + nbytes(wh) + nbytes(wo)
                      + nbytes(b0) + nbytes(bh) + nbytes(bo))
    cost = pl.CostEstimate(flops=flops, transcendentals=0,
                           bytes_accessed=int(bytes_accessed))

    kernel = functools.partial(deepsurv_kernel, n_hidden_layers=n_hidden_layers)

    out = pl.pallas_call(
        kernel,
        out_shape=jax.ShapeDtypeStruct((num_tiles, 1, tb), jnp.float32),
        grid_spec=pltpu.PrefetchScalarGridSpec(
            num_scalar_prefetch=0,
            grid=grid,
            in_specs=[
                pl.BlockSpec((tb, n_input), lambda i: (i, 0)),            # x (f32)
                pl.BlockSpec((n_input, hidden_dim), lambda i: (0, 0)),    # w0 bf16
                pl.BlockSpec((1, hidden_dim), lambda i: (0, 0)),          # b0 f32
                pl.BlockSpec((n_layers, hidden_dim, hidden_dim),
                             lambda i: (0, 0, 0)),                        # wh bf16
                pl.BlockSpec((n_layers, 1, hidden_dim),
                             lambda i: (0, 0, 0)),                        # bh f32
                pl.BlockSpec((1, hidden_dim), lambda i: (0, 0)),          # wo f32
                pl.BlockSpec(memory_space=pltpu.MemorySpace.SMEM),        # bo f32
            ],
            out_specs=pl.BlockSpec((1, 1, tb), lambda i: (i, 0, 0)),      # lane-dense
        ),
        compiler_params=pltpu.CompilerParams(
            dimension_semantics=("parallel",),   # shard batch tiles across TCs (v7x)
            vmem_limit_bytes=vmem_limit,
        ),
        cost_estimate=cost,
    )(x, w0, b0, wh, bh, wo, bo)

    # (num_tiles, 1, tb) -> (padded_batch, 1) -> drop padded rows.
    return out.reshape(padded_batch, 1)[:batch]


def init_params(key, n_input, n_hidden_layers, hidden_dim):
    """Deterministic f32 init mimicking nn.Linear's U(-1/sqrt(fan_in), +...)."""
    ks = jax.random.split(key, 6)

    def u(k, shape, fan_in):
        bound = fan_in ** -0.5
        return jax.random.uniform(k, shape, jnp.float32, -bound, bound)

    w0 = u(ks[0], (n_input, hidden_dim), n_input)
    b0 = u(ks[1], (1, hidden_dim), n_input)
    wh = u(ks[2], (n_hidden_layers, hidden_dim, hidden_dim), hidden_dim)
    bh = u(ks[3], (n_hidden_layers, 1, hidden_dim), hidden_dim)
    wo = u(ks[4], (1, hidden_dim), hidden_dim)
    bo = u(ks[5], (1,), hidden_dim)
    return w0, b0, wh, bh, wo, bo


def reference_forward(x, params_f32):
    """Plain-JAX reference (eval-mode DeepSurv, relu, no batchnorm).

    Uses the same bf16-operand / f32-accumulate recipe as the kernel (layers on
    the MXU in bf16, head in f32) so the comparison isolates kernel correctness
    from quantization.  NOTE: this intentionally diverges from PyTorch's pure
    f32 nn.Linear semantics (inference-grade accuracy).
    """
    w0, b0, wh, bh, wo, bo = params_f32
    h = jnp.dot(x.astype(jnp.bfloat16), w0.astype(jnp.bfloat16),
                preferred_element_type=jnp.float32)
    h = jnp.maximum(h + b0, 0.0)
    for n in range(wh.shape[0]):
        h = jnp.dot(h.astype(jnp.bfloat16), wh[n].astype(jnp.bfloat16),
                    preferred_element_type=jnp.float32)
        h = jnp.maximum(h + bh[n], 0.0)
    return jnp.sum(h * wo, axis=-1, keepdims=True) + bo[0]


if __name__ == "__main__":
    # Small test shapes (hidden=32).  batch=50 is deliberately not a multiple
    # of the tile so the padding + slice path is exercised; block_batch=32
    # forces a 2-step grid so the tiled/pipelined path is exercised too.
    n_input = 16
    n_hidden_layers = 2
    hidden_dim = 32
    batch = 50

    key = jax.random.PRNGKey(0)
    k_x, k_p = jax.random.split(key)
    x = jax.random.normal(k_x, (batch, n_input), dtype=jnp.float32)
    params_f32 = init_params(k_p, n_input, n_hidden_layers, hidden_dim)
    params = prepare_params(params_f32)   # one-time bf16 cast of MXU weights

    out = deepsurv_forward(x, params, n_hidden_layers=n_hidden_layers,
                           block_batch=32)
    out = jax.block_until_ready(out)

    ref = reference_forward(x, params_f32)
    assert out.shape == (batch, 1), out.shape
    err = jnp.max(jnp.abs(out - ref))
    assert jnp.allclose(out, ref, atol=1e-2, rtol=1e-2), f"max abs err {err}"

    print("KERNEL_OK")
</pallas_src>

<mosaic_0001>
module attributes {stable_mosaic.version = 11 : i64} {
  func.func @deepsurv_kernel(%arg0: i32, %arg1: memref<32x16xf32, #tpu.memory_space<vmem>>, %arg2: memref<16x32xbf16, #tpu.memory_space<vmem>>, %arg3: memref<1x32xf32, #tpu.memory_space<vmem>>, %arg4: memref<2x32x32xbf16, #tpu.memory_space<vmem>>, %arg5: memref<2x1x32xf32, #tpu.memory_space<vmem>>, %arg6: memref<1x32xf32, #tpu.memory_space<vmem>>, %arg7: memref<1xf32, #tpu.memory_space<smem>>, %arg8: memref<1x1x32xf32, #tpu.memory_space<vmem>>) attributes {dimension_semantics = [#tpu.dimension_semantics<parallel>], iteration_bounds = array<i64: 2>, scalar_prefetch = 0 : i64, scratch_operands = 0 : i64, tpu.core_type = #tpu.core_type<tc>, window_params = [{transform_indices = @transform_0, window_bounds = array<i64: 32, 16>}, {pipeline_mode = #tpu.pipeline_mode<synchronous>, transform_indices = @transform_1, window_bounds = array<i64: 16, 32>}, {pipeline_mode = #tpu.pipeline_mode<synchronous>, transform_indices = @transform_2, window_bounds = array<i64: 1, 32>}, {pipeline_mode = #tpu.pipeline_mode<synchronous>, transform_indices = @transform_3, window_bounds = array<i64: 2, 32, 32>}, {pipeline_mode = #tpu.pipeline_mode<synchronous>, transform_indices = @transform_4, window_bounds = array<i64: 2, 1, 32>}, {pipeline_mode = #tpu.pipeline_mode<synchronous>, transform_indices = @transform_5, window_bounds = array<i64: 1, 32>}, {transform_indices = @transform_6, window_bounds = array<i64: 1>}, {transform_indices = @transform_7, window_bounds = array<i64: 1, 1, 32>}]} {
    %c0 = arith.constant 0 : index
    %c0_0 = arith.constant 0 : index
    %0 = vector.load %arg1[%c0, %c0_0] : memref<32x16xf32, #tpu.memory_space<vmem>>, vector<32x16xf32>
    %1 = arith.truncf %0 : vector<32x16xf32> to vector<32x16xbf16>
    %c0_1 = arith.constant 0 : index
    %c0_2 = arith.constant 0 : index
    %2 = vector.load %arg2[%c0_1, %c0_2] : memref<16x32xbf16, #tpu.memory_space<vmem>>, vector<16x32xbf16>
    %cst = arith.constant dense<0.000000e+00> : vector<32x32xf32>
    %3 = tpu.matmul %1, %2, %cst {dimension_numbers = #tpu.dot_dimension_numbers<[1], [0], [0], [1], [0, 0, 1, 1], [], []>} : vector<32x16xbf16>, vector<16x32xbf16>, vector<32x32xf32> -> vector<32x32xf32>
    %c0_3 = arith.constant 0 : index
    %c0_4 = arith.constant 0 : index
    %4 = vector.load %arg3[%c0_3, %c0_4] : memref<1x32xf32, #tpu.memory_space<vmem>>, vector<1x32xf32>
    %5 = vector.broadcast %4 : vector<1x32xf32> to vector<32x32xf32>
    %6 = arith.addf %3, %5 : vector<32x32xf32>
    %cst_5 = arith.constant 0.000000e+00 : f32
    %7 = vector.broadcast %cst_5 : f32 to vector<32x32xf32>
    %8 = arith.maximumf %6, %7 : vector<32x32xf32>
    %9 = arith.truncf %8 : vector<32x32xf32> to vector<32x32xbf16>
    %c0_6 = arith.constant 0 : index
    %c0_7 = arith.constant 0 : index
    %c0_8 = arith.constant 0 : index
    %10 = vector.load %arg4[%c0_6, %c0_7, %c0_8] : memref<2x32x32xbf16, #tpu.memory_space<vmem>>, vector<1x32x32xbf16>
    %11 = vector.shape_cast %10 : vector<1x32x32xbf16> to vector<32x32xbf16>
    %cst_9 = arith.constant dense<0.000000e+00> : vector<32x32xf32>
    %12 = tpu.matmul %9, %11, %cst_9 {dimension_numbers = #tpu.dot_dimension_numbers<[1], [0], [0], [1], [0, 0, 1, 1], [], []>} : vector<32x32xbf16>, vector<32x32xbf16>, vector<32x32xf32> -> vector<32x32xf32>
    %c0_10 = arith.constant 0 : index
    %c0_11 = arith.constant 0 : index
    %c0_12 = arith.constant 0 : index
    %13 = vector.load %arg5[%c0_10, %c0_11, %c0_12] : memref<2x1x32xf32, #tpu.memory_space<vmem>>, vector<1x1x32xf32>
    %14 = vector.shape_cast %13 : vector<1x1x32xf32> to vector<1x32xf32>
    %15 = vector.broadcast %14 : vector<1x32xf32> to vector<32x32xf32>
    %16 = arith.addf %12, %15 : vector<32x32xf32>
    %cst_13 = arith.constant 0.000000e+00 : f32
    %17 = vector.broadcast %cst_13 : f32 to vector<32x32xf32>
    %18 = arith.maximumf %16, %17 : vector<32x32xf32>
    %19 = arith.truncf %18 : vector<32x32xf32> to vector<32x32xbf16>
    %c1 = arith.constant 1 : index
    %c0_14 = arith.constant 0 : index
    %c0_15 = arith.constant 0 : index
    %20 = vector.load %arg4[%c1, %c0_14, %c0_15] : memref<2x32x32xbf16, #tpu.memory_space<vmem>>, vector<1x32x32xbf16>
    %21 = vector.shape_cast %20 : vector<1x32x32xbf16> to vector<32x32xbf16>
    %cst_16 = arith.constant dense<0.000000e+00> : vector<32x32xf32>
    %22 = tpu.matmul %19, %21, %cst_16 {dimension_numbers = #tpu.dot_dimension_numbers<[1], [0], [0], [1], [0, 0, 1, 1], [], []>} : vector<32x32xbf16>, vector<32x32xbf16>, vector<32x32xf32> -> vector<32x32xf32>
    %c1_17 = arith.constant 1 : index
    %c0_18 = arith.constant 0 : index
    %c0_19 = arith.constant 0 : index
    %23 = vector.load %arg5[%c1_17, %c0_18, %c0_19] : memref<2x1x32xf32, #tpu.memory_space<vmem>>, vector<1x1x32xf32>
    %24 = vector.shape_cast %23 : vector<1x1x32xf32> to vector<1x32xf32>
    %25 = vector.broadcast %24 : vector<1x32xf32> to vector<32x32xf32>
    %26 = arith.addf %22, %25 : vector<32x32xf32>
    %cst_20 = arith.constant 0.000000e+00 : f32
    %27 = vector.broadcast %cst_20 : f32 to vector<32x32xf32>
    %28 = arith.maximumf %26, %27 : vector<32x32xf32>
    %c0_21 = arith.constant 0 : index
    %c0_22 = arith.constant 0 : index
    %29 = vector.load %arg6[%c0_21, %c0_22] : memref<1x32xf32, #tpu.memory_space<vmem>>, vector<1x32xf32>
    %30 = vector.broadcast %29 : vector<1x32xf32> to vector<32x32xf32>
    %31 = arith.mulf %28, %30 : vector<32x32xf32>
    %cst_23 = arith.constant dense<0.000000e+00> : vector<32xf32>
    %32 = vector.multi_reduction <add>, %31, %cst_23 [1] : vector<32x32xf32> to vector<32xf32>
    %c0_24 = arith.constant 0 : index
    %33 = memref.load %arg7[%c0_24] : memref<1xf32, #tpu.memory_space<smem>>
    %34 = vector.broadcast %33 : f32 to vector<32xf32>
    %35 = arith.addf %32, %34 : vector<32xf32>
    %36 = vector.shape_cast %35 : vector<32xf32> to vector<1x1x32xf32>
    %c0_25 = arith.constant 0 : index
    %c0_26 = arith.constant 0 : index
    %c0_27 = arith.constant 0 : index
    %37 = vector.load %arg8[%c0_25, %c0_26, %c0_27] : memref<1x1x32xf32, #tpu.memory_space<vmem>>, vector<1x1x32xf32>
    tpu.vector_store %arg8[%c0_25, %c0_26, %c0_27], %36 {strides = array<i32>} : memref<1x1x32xf32, #tpu.memory_space<vmem>>, vector<1x1x32xf32>,
    return
  }
  func.func @transform_0(%arg0: i32) -> (i32, i32) {
    %c0_i32 = arith.constant 0 : i32
    %c0_i32_0 = arith.constant 0 : i32
    return %arg0, %c0_i32 : i32, i32
  }
  func.func @transform_1(%arg0: i32) -> (i32, i32) {
    %c0_i32 = arith.constant 0 : i32
    %c0_i32_0 = arith.constant 0 : i32
    %c0_i32_1 = arith.constant 0 : i32
    return %c0_i32, %c0_i32_0 : i32, i32
  }
  func.func @transform_2(%arg0: i32) -> (i32, i32) {
    %c0_i32 = arith.constant 0 : i32
    %c0_i32_0 = arith.constant 0 : i32
    %c0_i32_1 = arith.constant 0 : i32
    return %c0_i32, %c0_i32_0 : i32, i32
  }
  func.func @transform_3(%arg0: i32) -> (i32, i32, i32) {
    %c0_i32 = arith.constant 0 : i32
    %c0_i32_0 = arith.constant 0 : i32
    %c0_i32_1 = arith.constant 0 : i32
    %c0_i32_2 = arith.constant 0 : i32
    return %c0_i32, %c0_i32_0, %c0_i32_1 : i32, i32, i32
  }
  func.func @transform_4(%arg0: i32) -> (i32, i32, i32) {
    %c0_i32 = arith.constant 0 : i32
    %c0_i32_0 = arith.constant 0 : i32
    %c0_i32_1 = arith.constant 0 : i32
    %c0_i32_2 = arith.constant 0 : i32
    return %c0_i32, %c0_i32_0, %c0_i32_1 : i32, i32, i32
  }
  func.func @transform_5(%arg0: i32) -> (i32, i32) {
    %c0_i32 = arith.constant 0 : i32
    %c0_i32_0 = arith.constant 0 : i32
    %c0_i32_1 = arith.constant 0 : i32
    return %c0_i32, %c0_i32_0 : i32, i32
  }
  func.func @transform_6(%arg0: i32) -> i32 {
    %c0_i32 = arith.constant 0 : i32
    %c0_i32_0 = arith.constant 0 : i32
    return %c0_i32 : i32
  }
  func.func @transform_7(%arg0: i32) -> (i32, i32, i32) {
    %c0_i32 = arith.constant 0 : i32
    %c0_i32_0 = arith.constant 0 : i32
    %c0_i32_1 = arith.constant 0 : i32
    return %arg0, %c0_i32, %c0_i32_0 : i32, i32, i32
  }
}

</mosaic_0001>

<llo_original>
// kernel: tpu_custom_call.1
$region0: #{tpu_custom_call.1}
  #allocation0 [shape = 'u32[]', space=smem, size = 0x4, offset = 0x4, fixed_abs, tag = 'smem constant byte address 0x4 - core index']
  #allocation1 [shape = 'u32[144,128]{1,0:T(1,128)}', space=vmem, size = 0x12000, scoped, tag = 'internal scratch']
  #allocation2 [shape = 'f32[1]{0:T(128)S(6)}', space=smem, size = 0x200, scoped, tag = 'scoped memory for tpu_custom_call.1']
  %s0 = inlined_call_operand.vmem [shape: f32[64,16], index: 0, kind: input, shape index: {}]
  %s1 = inlined_call_operand.vmem [shape: bf16[16,32], index: 1, kind: input, shape index: {}]
  %s2 = inlined_call_operand.vmem [shape: f32[1,32], index: 2, kind: input, shape index: {}]
  %s3 = inlined_call_operand.vmem [shape: bf16[2,32,32], index: 3, kind: input, shape index: {}]
  %s4 = inlined_call_operand.vmem [shape: f32[2,1,32], index: 4, kind: input, shape index: {}]
  %s5 = inlined_call_operand.vmem [shape: f32[1,32], index: 5, kind: input, shape index: {}]
  %s6 = inlined_call_operand.<no memory space> [shape: f32[1], index: 6, kind: input, shape index: {}]
  %s7 = inlined_call_operand.hbm [shape: f32[2,1,32], index: 7, kind: output, shape index: {}]
  %s8 = sld [smem:[#allocation0]]
  $region61: #{tpu_custom_call.1} parent=0
    _
  %s10 = ssub.s32 1, %s8
  %s11 = scalar_select 0, %s10, %s8
  %12 = sst [smem:[#allocation2]] %s6
  $region1: #{tpu_custom_call.1} parent=0
    #allocation3 [shape = 'u8[1024]{0}', space=vmem, size = 0x400, scoped, tag = 'output window, operand 0']
    #allocation4 [shape = 's32[2]{0}', space=sflag, size = 0x8, scoped, tag = 'scoped memory for tpu_custom_call.1']
    %13 = vsyncpa [#allocation4], 0
    %s14 = scalar_lea.sflag [#allocation4], 1
    %15 = vsyncpa %s14, 0
    loop: start=0, step=1, limit=4
    $region2: #{tpu_custom_call.1} parent=1 // loop_pre_header
      _
    $region3: #{tpu_custom_call.1} parent=1 // loop_header
      %s17 = sphi 0, %s21
      %p18 = scmp.ge.s32.totalorder %s17, 4
      %s27 = sphi 0, %s29
      %s30 = sphi 0, %s27
      %s31 = sphi 0, %s30
      %s47 = sphi 0, %s31
      %s51 = sphi 0, %s51
      %s53 = sphi 0, %s51
      %s54 = sphi 0, %s53
      %s68 = sphi 0, %s54
      %s72 = sphi 0, %s72
      %s74 = sphi 0, %s72
      %s75 = sphi 0, %s74
      %s89 = sphi 0, %s75
      %s93 = sphi 0, %s93
      %s95 = sphi 0, %s93
      %s96 = sphi 0, %s95
      %s110 = sphi 0, %s96
      %s114 = sphi 0, %s114
      %s116 = sphi 0, %s114
      %s117 = sphi 0, %s116
      %s131 = sphi 0, %s117
      %s135 = sphi 0, %s135
      %s137 = sphi 0, %s135
      %s138 = sphi 0, %s137
      %s152 = sphi 0, %s138
      %s156 = sphi 0, %s156
      %s158 = sphi 0, %s156
      %s159 = sphi 0, %s158
      %s173 = sphi 0, %s159
      %s179 = sphi 0, %s181
      %s182 = sphi 0, %s179
      %s183 = sphi 0, %s182
      %s199 = sphi 0, %s183
    $region4: #{tpu_custom_call.1} parent=1 // loop_header_branch
      %20 = sbr.rel (%p18) target = $region8
    $region5: #{tpu_custom_call.1} parent=1 // loop_body
      %s22 = ssub.s32 %s17, 1
      %s23 = ssub.s32 %s17, 2
      %s24 = sadd.s32 %s17, 1
      %s25 = ssub.s32 %s17, %s24
      %p26 = scmp.eq.s32.totalorder %s25, 0
      %s28 = sadd.s32 %s27, 1
      %s29 = scalar_select %p26, %s27, %s28
      %p32 = pneg %p26
      %p33 = scmp.eq.s32.totalorder %s17, 1
      %p34 = por %p32, %p33
      %p35 = scmp.ne.s32.totalorder %s27, %s30
      %p36 = scmp.eq.s32.totalorder %s17, 0
      %p37 = por %p35, %p36
      %p38 = scmp.ne.s32.totalorder %s27, %s30
      %p39 = scmp.eq.s32.totalorder %s22, 1
      %p40 = por %p38, %p39
      %p41 = scmp.ne.s32.totalorder %s30, %s31
      %p42 = scmp.eq.s32.totalorder %s22, 0
      %p43 = por %p41, %p42
      %p44 = scmp.ne.s32.totalorder %s30, %s31
      %p45 = scmp.eq.s32.totalorder %s23, 1
      %p46 = por %p44, %p45
      %p48 = scmp.ne.s32.totalorder %s31, %s47
      %p49 = scmp.eq.s32.totalorder %s23, 0
      %p50 = por %p48, %p49
      %s52 = sadd.s32 %s51, 1
      %p55 = scmp.eq.s32.totalorder %s17, 1
      %p56 = scmp.ne.s32.totalorder %s51, %s53
      %p57 = scmp.eq.s32.totalorder %s17, 0
      %p58 = por %p56, %p57
      %p59 = scmp.ne.s32.totalorder %s51, %s53
      %p60 = scmp.eq.s32.totalorder %s22, 1
      %p61 = por %p59, %p60
      %p62 = scmp.ne.s32.totalorder %s53, %s54
      %p63 = scmp.eq.s32.totalorder %s22, 0
      %p64 = por %p62, %p63
      %p65 = scmp.ne.s32.totalorder %s53, %s54
      %p66 = scmp.eq.s32.totalorder %s23, 1
      %p67 = por %p65, %p66
      %p69 = scmp.ne.s32.totalorder %s54, %s68
      %p70 = scmp.eq.s32.totalorder %s23, 0
      %p71 = por %p69, %p70
      %s73 = sadd.s32 %s72, 1
      %p76 = scmp.eq.s32.totalorder %s17, 1
      %p77 = scmp.ne.s32.totalorder %s72, %s74
      %p78 = scmp.eq.s32.totalorder %s17, 0
      %p79 = por %p77, %p78
      %p80 = scmp.ne.s32.totalorder %s72, %s74
      %p81 = scmp.eq.s32.totalorder %s22, 1
      %p82 = por %p80, %p81
      %p83 = scmp.ne.s32.totalorder %s74, %s75
      %p84 = scmp.eq.s32.totalorder %s22, 0
      %p85 = por %p83, %p84
      %p86 = scmp.ne.s32.totalorder %s74, %s75
      %p87 = scmp.eq.s32.totalorder %s23, 1
      %p88 = por %p86, %p87
      %p90 = scmp.ne.s32.totalorder %s75, %s89
      %p91 = scmp.eq.s32.totalorder %s23, 0
      %p92 = por %p90, %p91
      %s94 = sadd.s32 %s93, 1
      %p97 = scmp.eq.s32.totalorder %s17, 1
      %p98 = scmp.ne.s32.totalorder %s93, %s95
      %p99 = scmp.eq.s32.totalorder %s17, 0
      %p100 = por %p98, %p99
      %p101 = scmp.ne.s32.totalorder %s93, %s95
      %p102 = scmp.eq.s32.totalorder %s22, 1
      %p103 = por %p101, %p102
      %p104 = scmp.ne.s32.totalorder %s95, %s96
      %p105 = scmp.eq.s32.totalorder %s22, 0
      %p106 = por %p104, %p105
      %p107 = scmp.ne.s32.totalorder %s95, %s96
      %p108 = scmp.eq.s32.totalorder %s23, 1
      %p109 = por %p107, %p108
      %p111 = scmp.ne.s32.totalorder %s96, %s110
      %p112 = scmp.eq.s32.totalorder %s23, 0
      %p113 = por %p111, %p112
      %s115 = sadd.s32 %s114, 1
      %p118 = scmp.eq.s32.totalorder %s17, 1
      %p119 = scmp.ne.s32.totalorder %s114, %s116
      %p120 = scmp.eq.s32.totalorder %s17, 0
      %p121 = por %p119, %p120
      %p122 = scmp.ne.s32.totalorder %s114, %s116
      %p123 = scmp.eq.s32.totalorder %s22, 1
      %p124 = por %p122, %p123
      %p125 = scmp.ne.s32.totalorder %s116, %s117
      %p126 = scmp.eq.s32.totalorder %s22, 0
      %p127 = por %p125, %p126
      %p128 = scmp.ne.s32.totalorder %s116, %s117
      %p129 = scmp.eq.s32.totalorder %s23, 1
      %p130 = por %p128, %p129
      %p132 = scmp.ne.s32.totalorder %s117, %s131
      %p133 = scmp.eq.s32.totalorder %s23, 0
      %p134 = por %p132, %p133
      %s136 = sadd.s32 %s135, 1
      %p139 = scmp.eq.s32.totalorder %s17, 1
      %p140 = scmp.ne.s32.totalorder %s135, %s137
      %p141 = scmp.eq.s32.totalorder %s17, 0
      %p142 = por %p140, %p141
      %p143 = scmp.ne.s32.totalorder %s135, %s137
      %p144 = scmp.eq.s32.totalorder %s22, 1
      %p145 = por %p143, %p144
      %p146 = scmp.ne.s32.totalorder %s137, %s138
      %p147 = scmp.eq.s32.totalorder %s22, 0
      %p148 = por %p146, %p147
      %p149 = scmp.ne.s32.totalorder %s137, %s138
      %p150 = scmp.eq.s32.totalorder %s23, 1
      %p151 = por %p149, %p150
      %p153 = scmp.ne.s32.totalorder %s138, %s152
      %p154 = scmp.eq.s32.totalorder %s23, 0
      %p155 = por %p153, %p154
      %s157 = sadd.s32 %s156, 1
      %p160 = scmp.eq.s32.totalorder %s17, 1
      %p161 = scmp.ne.s32.totalorder %s156, %s158
      %p162 = scmp.eq.s32.totalorder %s17, 0
      %p163 = por %p161, %p162
      %p164 = scmp.ne.s32.totalorder %s156, %s158
      %p165 = scmp.eq.s32.totalorder %s22, 1
      %p166 = por %p164, %p165
      %p167 = scmp.ne.s32.totalorder %s158, %s159
      %p168 = scmp.eq.s32.totalorder %s22, 0
      %p169 = por %p167, %p168
      %p170 = scmp.ne.s32.totalorder %s158, %s159
      %p171 = scmp.eq.s32.totalorder %s23, 1
      %p172 = por %p170, %p171
      %p174 = scmp.ne.s32.totalorder %s159, %s173
      %p175 = scmp.eq.s32.totalorder %s23, 0
      %p176 = por %p174, %p175
      %s177 = ssub.s32 %s17, %s24
      %p178 = scmp.eq.s32.totalorder %s177, 0
      %s180 = sadd.s32 %s179, 1
      %s181 = scalar_select %p178, %s179, %s180
      %p184 = pneg %p178
      %p185 = scmp.eq.s32.totalorder %s17, 1
      %p186 = por %p184, %p185
      %p187 = scmp.ne.s32.totalorder %s179, %s182
      %p188 = scmp.eq.s32.totalorder %s17, 0
      %p189 = por %p187, %p188
      %p190 = scmp.ne.s32.totalorder %s179, %s182
      %p191 = scmp.eq.s32.totalorder %s22, 1
      %p192 = por %p190, %p191
      %p193 = scmp.ne.s32.totalorder %s182, %s183
      %p194 = scmp.eq.s32.totalorder %s22, 0
      %p195 = por %p193, %p194
      %p196 = scmp.ne.s32.totalorder %s182, %s183
      %p197 = scmp.eq.s32.totalorder %s23, 1
      %p198 = por %p196, %p197
      %p200 = scmp.ne.s32.totalorder %s183, %s199
      %p201 = scmp.eq.s32.totalorder %s23, 0
      %p202 = por %p200, %p201
      %p203 = scmp.le.s32.totalorder 1, %s17
      %p204 = scmp.lt.s32.totalorder %s17, 3
      %p205 = pnand %p203, %p204
      %p206 = pneg %p205
      // Predicated region
      $region9: #{tpu_custom_call.1} parent=5 // pred_check
        _
      $region10: #{tpu_custom_call.1} parent=5 // pred_check_branch
        %208 = sbr.rel (%p205) target = $region12
      $region11: #{tpu_custom_call.1} parent=5 // pred_region
        %s209 = ssub.s32 %s17, 1
        // Predicated region
        $region13: #{tpu_custom_call.1} parent=11 // pred_check
          %p210 = pneg %p64
        $region14: #{tpu_custom_call.1} parent=11 // pred_check_branch
          %212 = sbr.rel (%p210) target = $region16
        $region15: #{tpu_custom_call.1} parent=11 // pred_region
          _
        $region16: #{tpu_custom_call.1} parent=11 // pred_fallthru
          _
        // Predicated region
        $region17: #{tpu_custom_call.1} parent=11 // pred_check
          %p213 = pneg %p85
        $region18: #{tpu_custom_call.1} parent=11 // pred_check_branch
          %215 = sbr.rel (%p213) target = $region20
        $region19: #{tpu_custom_call.1} parent=11 // pred_region
          _
        $region20: #{tpu_custom_call.1} parent=11 // pred_fallthru
          _
        // Predicated region
        $region21: #{tpu_custom_call.1} parent=11 // pred_check
          %p216 = pneg %p106
        $region22: #{tpu_custom_call.1} parent=11 // pred_check_branch
          %218 = sbr.rel (%p216) target = $region24
        $region23: #{tpu_custom_call.1} parent=11 // pred_region
          _
        $region24: #{tpu_custom_call.1} parent=11 // pred_fallthru
          _
        // Predicated region
        $region25: #{tpu_custom_call.1} parent=11 // pred_check
          %p219 = pneg %p127
        $region26: #{tpu_custom_call.1} parent=11 // pred_check_branch
          %221 = sbr.rel (%p219) target = $region28
        $region27: #{tpu_custom_call.1} parent=11 // pred_region
          _
        $region28: #{tpu_custom_call.1} parent=11 // pred_fallthru
          _
        // Predicated region
        $region29: #{tpu_custom_call.1} parent=11 // pred_check
          %p222 = pneg %p148
        $region30: #{tpu_custom_call.1} parent=11 // pred_check_branch
          %224 = sbr.rel (%p222) target = $region32
        $region31: #{tpu_custom_call.1} parent=11 // pred_region
          _
        $region32: #{tpu_custom_call.1} parent=11 // pred_fallthru
          _
        // Predicated region
        $region33: #{tpu_custom_call.1} parent=11 // pred_check
          %p225 = pneg %p169
        $region34: #{tpu_custom_call.1} parent=11 // pred_check_branch
          %227 = sbr.rel (%p225) target = $region36
        $region35: #{tpu_custom_call.1} parent=11 // pred_region
          _
        $region36: #{tpu_custom_call.1} parent=11 // pred_fallthru
          _
      $region12: #{tpu_custom_call.1} parent=5 // pred_fallthru
        _
      %p228 = scmp.lt.s32.totalorder %s17, 2
      // Predicated region
      $region37: #{tpu_custom_call.1} parent=5 // pred_check
        %p229 = pneg %p228
      $region38: #{tpu_custom_call.1} parent=5 // pred_check_branch
        %231 = sbr.rel (%p229) target = $region40
      $region39: #{tpu_custom_call.1} parent=5 // pred_region
        // Predicated region
        $region41: #{tpu_custom_call.1} parent=39 // pred_check
          %p232 = pneg %p37
        $region42: #{tpu_custom_call.1} parent=39 // pred_check_branch
          %234 = sbr.rel (%p232) target = $region44
        $region43: #{tpu_custom_call.1} parent=39 // pred_region
          %s235 = smul.u32 4, %s17
          %p236 = scmp.lt.s32.totalorder %s235, 7
          %s237 = scalar_select %p236, %s235, 7
          %s238 = smul.addr %s237, 8
          %s239 = scalar_lea.vmem %s0, %s238
          %s240 = smul.u32 4, %s17
        $region44: #{tpu_custom_call.1} parent=39 // pred_fallthru
          _
      $region40: #{tpu_custom_call.1} parent=5 // pred_fallthru
        _
      %p241 = scmp.le.s32.totalorder 1, %s17
      %p242 = scmp.lt.s32.totalorder %s17, 3
      %p243 = pnand %p241, %p242
      %p244 = pneg %p243
      // Predicated region
      $region45: #{tpu_custom_call.1} parent=5 // pred_check
        _
      $region46: #{tpu_custom_call.1} parent=5 // pred_check_branch
        %246 = sbr.rel (%p243) target = $region48
      $region47: #{tpu_custom_call.1} parent=5 // pred_region
        %s247 = ssub.s32 %s17, 1
        %s248 = smul.u32 4, %s22
        %p249 = scmp.lt.s32.totalorder %s248, 7
        %s250 = scalar_select %p249, %s248, 7
        %s251 = smul.addr %s250, 8
        %s252 = scalar_lea.vmem %s0, %s251
        %p253 = pneg %p43
        %p254 = pneg %p40
        %p255 = pneg %p64
        %p256 = pneg %p61
        %p257 = pneg %p85
        %p258 = pneg %p82
        %p259 = pneg %p106
        %p260 = pneg %p103
        %p261 = pneg %p127
        %p262 = pneg %p124
        %p263 = pneg %p148
        %p264 = pneg %p145
        %p265 = pneg %p169
        %p266 = pneg %p166
        %p267 = pneg %p195
        %p268 = pneg %p192
        %s269 = sand.u32 %s182, 1
        %s270 = scalar_lea.sflag [#allocation4], %s269
        %s271 = sand.u32 %s182, 1
        %s272 = scalar_lea.vmem [#allocation3], %s271
        %s273 = smul.u32 4, %s22
        %p274 = scmp.lt.s32.totalorder %s273, 7
        %s275 = scalar_select %p274, %s273, 7
        %s276 = smul.addr %s275, 8
        %s277 = scalar_lea.vmem %s0, %s276
        %s278 = smul.u32 4, %s22
        %v280 = vld [vmem:[%s277] sm:$0xff]
        %v281 = vld [vmem:[%s277 + $0x8] sm:$0xff]
        %v282 = vld [vmem:[%s277 + $0x10] sm:$0xff]
        %v283 = vld [vmem:[%s277 + $0x18] sm:$0xff]
        %v284 = vpack.c.bf16 %v281, %v280
        %v285 = vpack.c.bf16 %v283, %v282
        %v286 = vld [vmem:[%s1] sm:$0xf]
        %v287 = vld [vmem:[%s1 + $0x4] sm:$0xf]
        %v288 = vld [vmem:[%s2] sm:$0x1]
        %v290 = vlaneseq
        %v291 = vshrl.u32 %v290, 7
        %v292 = vsub.s32 0, %v291
        %v293 = vrot.slane %v288, %v292
        %v297 = vunpack.c.l.b16 %v286
        %v298 = vunpack.c.l.b16 %v287
        %v299 = vpack.c.b16 %v298, %v297
        %vm301 = vcmask 130048
        %v303 = vsel %vm301, %v284, 0
        %v306 = vsel %vm301, %v285, 0
        %308 = vmatprep.subr.bf16.mxu0 0
        %309 = vmatpush1.bf16.msra.mxu0 %v299
        %310 = vmatprep.subr.bf16.mxu0 0
        %311 = vmatpush1.bf16.msra.mxu0 0
        %312 = vmatprep.subr.bf16.mxu0 0
        %313 = vmatpush1.bf16.msra.mxu0 0
        %314 = vmatprep.subr.bf16.mxu0 0
        %315 = vmatpush1.bf16.msra.mxu0 0
        %316 = vmatprep.subr.bf16.mxu0 0
        %317 = vmatpush1.bf16.msra.mxu0 0
        %318 = vmatprep.subr.bf16.mxu0 0
        %319 = vmatpush1.bf16.msra.mxu0 0
        %320 = vmatprep.subr.bf16.mxu0 0
        %321 = vmatpush1.bf16.msra.mxu0 0
        %322 = vmatprep.subr.bf16.mxu0 0
        %323 = vmatpush1.bf16.msra.mxu0 0
        %324 = vmatprep.subr.bf16.mxu0 0
        %325 = vmatpush1.bf16.msra.mxu0 0
        %326 = vmatprep.subr.bf16.mxu0 0
        %327 = vmatpush1.bf16.msra.mxu0 0
        %328 = vmatprep.subr.bf16.mxu0 0
        %329 = vmatpush1.bf16.msra.mxu0 0
        %330 = vmatprep.subr.bf16.mxu0 0
        %331 = vmatpush1.bf16.msra.mxu0 0
        %332 = vmatprep.subr.bf16.mxu0 0
        %333 = vmatpush1.bf16.msra.mxu0 0
        %334 = vmatprep.subr.bf16.mxu0 0
        %335 = vmatpush1.bf16.msra.mxu0 0
        %336 = vmatprep.subr.bf16.mxu0 0
        %337 = vmatpush1.bf16.msra.mxu0 0
        %338 = vmatprep.subr.bf16.mxu0 0
        %339 = vmatpush1.bf16.msra.mxu0 0
        %340 = vmatprep.mubr.bf16.mxu0 0
        %341 = vmatmul.mubr.bf16.gmra.mrb[0].mxu0 %v303
        %v342 = vpop.f32.mrb[0].mxu0
        %v343 = vadd.f32 %v293, %v342
        %v344 = vpop.f32.mrb[0].mxu0
        %v345 = vpop.f32.mrb[0].mxu0
        %v346 = vadd.f32 %v293, %v345
        %v347 = vpop.f32.mrb[0].mxu0
        %348 = vmatprep.mubr.bf16.mxu0 0
        %349 = vmatmul.mubr.bf16.gmra.mrb[0].mxu0 %v306
        %v350 = vpop.f32.mrb[0].mxu0
        %v351 = vadd.f32 %v293, %v350
        %v352 = vpop.f32.mrb[0].mxu0
        %v353 = vpop.f32.mrb[0].mxu0
        %v354 = vadd.f32 %v293, %v353
        %v355 = vpop.f32.mrb[0].mxu0
        %356 = vdwg.mxu0
        %v357 = vmax.f32 %v343, 0.0
        %v358 = vmax.f32 %v346, 0.0
        %v359 = vmax.f32 %v351, 0.0
        %v360 = vmax.f32 %v354, 0.0
        %v361 = vpack.c.bf16 %v358, %v357
        %v362 = vpack.c.bf16 %v360, %v359
        %v363 = vld [vmem:[%s3] sm:$0xf]
        %v364 = vld [vmem:[%s3 + $0x4] sm:$0xf]
        %v365 = vld [vmem:[%s3 + $0x8] sm:$0xf]
        %v366 = vld [vmem:[%s3 + $0xc] sm:$0xf]
        %v367 = vld [vmem:[%s4] sm:$0x1]
        %v369 = vlaneseq
        %v370 = vshrl.u32 %v369, 7
        %v371 = vsub.s32 0, %v370
        %v372 = vrot.slane %v367, %v371
        %v378 = vunpack.c.l.b16 %v363
        %v379 = vunpack.c.l.b16 %v364
        %v380 = vunpack.c.l.b16 %v365
        %v381 = vunpack.c.l.b16 %v366
        %v382 = vpack.c.b16 %v379, %v378
        %v383 = vpack.c.b16 %v381, %v380
        %vm386 = vcmask 261120
        %v388 = vsel %vm386, %v361, 0
        %v391 = vsel %vm386, %v362, 0
        %393 = vmatprep.subr.bf16.mxu0 0
        %394 = vmatpush1.bf16.msra.mxu0 %v382
        %395 = vmatprep.subr.bf16.mxu0 0
        %396 = vmatpush1.bf16.msra.mxu0 %v383
        %397 = vmatprep.subr.bf16.mxu0 0
        %398 = vmatpush1.bf16.msra.mxu0 0
        %399 = vmatprep.subr.bf16.mxu0 0
        %400 = vmatpush1.bf16.msra.mxu0 0
        %401 = vmatprep.subr.bf16.mxu0 0
        %402 = vmatpush1.bf16.msra.mxu0 0
        %403 = vmatprep.subr.bf16.mxu0 0
        %404 = vmatpush1.bf16.msra.mxu0 0
        %405 = vmatprep.subr.bf16.mxu0 0
        %406 = vmatpush1.bf16.msra.mxu0 0
        %407 = vmatprep.subr.bf16.mxu0 0
        %408 = vmatpush1.bf16.msra.mxu0 0
        %409 = vmatprep.subr.bf16.mxu0 0
        %410 = vmatpush1.bf16.msra.mxu0 0
        %411 = vmatprep.subr.bf16.mxu0 0
        %412 = vmatpush1.bf16.msra.mxu0 0
        %413 = vmatprep.subr.bf16.mxu0 0
        %414 = vmatpush1.bf16.msra.mxu0 0
        %415 = vmatprep.subr.bf16.mxu0 0
        %416 = vmatpush1.bf16.msra.mxu0 0
        %417 = vmatprep.subr.bf16.mxu0 0
        %418 = vmatpush1.bf16.msra.mxu0 0
        %419 = vmatprep.subr.bf16.mxu0 0
        %420 = vmatpush1.bf16.msra.mxu0 0
        %421 = vmatprep.subr.bf16.mxu0 0
        %422 = vmatpush1.bf16.msra.mxu0 0
        %423 = vmatprep.subr.bf16.mxu0 0
        %424 = vmatpush1.bf16.msra.mxu0 0
        %425 = vmatprep.mubr.bf16.mxu0 0
        %426 = vmatmul.mubr.bf16.gmra.mrb[0].mxu0 %v388
        %v427 = vpop.f32.mrb[0].mxu0
        %v428 = vadd.f32 %v372, %v427
        %v429 = vpop.f32.mrb[0].mxu0
        %v430 = vpop.f32.mrb[0].mxu0
        %v431 = vadd.f32 %v372, %v430
        %v432 = vpop.f32.mrb[0].mxu0
        %433 = vmatprep.mubr.bf16.mxu0 0
        %434 = vmatmul.mubr.bf16.gmra.mrb[0].mxu0 %v391
        %v435 = vpop.f32.mrb[0].mxu0
        %v436 = vadd.f32 %v372, %v435
        %v437 = vpop.f32.mrb[0].mxu0
        %v438 = vpop.f32.mrb[0].mxu0
        %v439 = vadd.f32 %v372, %v438
        %v440 = vpop.f32.mrb[0].mxu0
        %441 = vdwg.mxu0
        %v442 = vmax.f32 %v428, 0.0
        %v443 = vmax.f32 %v431, 0.0
        %v444 = vmax.f32 %v436, 0.0
        %v445 = vmax.f32 %v439, 0.0
        %v446 = vpack.c.bf16 %v443, %v442
        %v447 = vpack.c.bf16 %v445, %v444
        %s448 = scalar_lea.vmem %s3, 16
        %v449 = vld [vmem:[%s448] sm:$0xf]
        %v450 = vld [vmem:[%s448 + $0x4] sm:$0xf]
        %v451 = vld [vmem:[%s448 + $0x8] sm:$0xf]
        %v452 = vld [vmem:[%s448 + $0xc] sm:$0xf]
        %s453 = scalar_lea.vmem %s4, 1
        %v454 = vld [vmem:[%s453] sm:$0x1]
        %v456 = vlaneseq
        %v457 = vshrl.u32 %v456, 7
        %v458 = vsub.s32 0, %v457
        %v459 = vrot.slane %v454, %v458
        %v465 = vunpack.c.l.b16 %v449
        %v466 = vunpack.c.l.b16 %v450
        %v467 = vunpack.c.l.b16 %v451
        %v468 = vunpack.c.l.b16 %v452
        %v469 = vpack.c.b16 %v466, %v465
        %v470 = vpack.c.b16 %v468, %v467
        %v474 = vsel %vm386, %v446, 0
        %v477 = vsel %vm386, %v447, 0
        %479 = vmatprep.subr.bf16.mxu0 0
        %480 = vmatpush1.bf16.msra.mxu0 %v469
        %481 = vmatprep.subr.bf16.mxu0 0
        %482 = vmatpush1.bf16.msra.mxu0 %v470
        %483 = vmatprep.subr.bf16.mxu0 0
        %484 = vmatpush1.bf16.msra.mxu0 0
        %485 = vmatprep.subr.bf16.mxu0 0
        %486 = vmatpush1.bf16.msra.mxu0 0
        %487 = vmatprep.subr.bf16.mxu0 0
        %488 = vmatpush1.bf16.msra.mxu0 0
        %489 = vmatprep.subr.bf16.mxu0 0
        %490 = vmatpush1.bf16.msra.mxu0 0
        %491 = vmatprep.subr.bf16.mxu0 0
        %492 = vmatpush1.bf16.msra.mxu0 0
        %493 = vmatprep.subr.bf16.mxu0 0
        %494 = vmatpush1.bf16.msra.mxu0 0
        %495 = vmatprep.subr.bf16.mxu0 0
        %496 = vmatpush1.bf16.msra.mxu0 0
        %497 = vmatprep.subr.bf16.mxu0 0
        %498 = vmatpush1.bf16.msra.mxu0 0
        %499 = vmatprep.subr.bf16.mxu0 0
        %500 = vmatpush1.bf16.msra.mxu0 0
        %501 = vmatprep.subr.bf16.mxu0 0
        %502 = vmatpush1.bf16.msra.mxu0 0
        %503 = vmatprep.subr.bf16.mxu0 0
        %504 = vmatpush1.bf16.msra.mxu0 0
        %505 = vmatprep.subr.bf16.mxu0 0
        %506 = vmatpush1.bf16.msra.mxu0 0
        %507 = vmatprep.subr.bf16.mxu0 0
        %508 = vmatpush1.bf16.msra.mxu0 0
        %509 = vmatprep.subr.bf16.mxu0 0
        %510 = vmatpush1.bf16.msra.mxu0 0
        %511 = vmatprep.mubr.bf16.mxu0 0
        %512 = vmatmul.mubr.bf16.gmra.mrb[0].mxu0 %v474
        %v513 = vpop.f32.mrb[0].mxu0
        %v514 = vadd.f32 %v459, %v513
        %v515 = vpop.f32.mrb[0].mxu0
        %v516 = vpop.f32.mrb[0].mxu0
        %v517 = vadd.f32 %v459, %v516
        %v518 = vpop.f32.mrb[0].mxu0
        %519 = vmatprep.mubr.bf16.mxu0 0
        %520 = vmatmul.mubr.bf16.gmra.mrb[0].mxu0 %v477
        %v521 = vpop.f32.mrb[0].mxu0
        %v522 = vadd.f32 %v459, %v521
        %v523 = vpop.f32.mrb[0].mxu0
        %v524 = vpop.f32.mrb[0].mxu0
        %v525 = vadd.f32 %v459, %v524
        %v526 = vpop.f32.mrb[0].mxu0
        %527 = vdwg.mxu0
        %v528 = vmax.f32 %v514, 0.0
        %v529 = vmax.f32 %v517, 0.0
        %v530 = vmax.f32 %v522, 0.0
        %v531 = vmax.f32 %v525, 0.0
        %v532 = vld [vmem:[%s5] sm:$0x1]
        %v534 = vlaneseq
        %v535 = vshrl.u32 %v534, 7
        %v536 = vsub.s32 0, %v535
        %v537 = vrot.slane %v532, %v536
        %v539 = vmul.f32 %v528, %v537
        %v540 = vmul.f32 %v529, %v537
        %v541 = vmul.f32 %v530, %v537
        %v542 = vmul.f32 %v531, %v537
        %v543 = vsel %vm386, %v539, 0.0
        %544 = vadd.xlane.f32.xlu0 %v543
        %v545 = vpop.xlane.xlu0 %544
        %v546 = vsel %vm386, %v540, 0.0
        %547 = vadd.xlane.f32.xlu0 %v546
        %v548 = vpop.xlane.xlu0 %547
        %v549 = vsel %vm386, %v541, 0.0
        %550 = vadd.xlane.f32.xlu0 %v549
        %v551 = vpop.xlane.xlu0 %550
        %v552 = vsel %vm386, %v542, 0.0
        %553 = vadd.xlane.f32.xlu0 %v552
        %v554 = vpop.xlane.xlu0 %553
        %s555 = sld [smem:[#allocation2]]
        %v556 = vstv %s555
        %v557 = vadd.f32 %v545, %v556
        %v558 = vadd.f32 %v548, %v556
        %v559 = vadd.f32 %v551, %v556
        %v560 = vadd.f32 %v554, %v556
        %v565 = vlaneseq
        %v566 = vand.u32 %v565, 127
        %v567 = vlaneseq
        %v568 = vshrl.u32 %v567, 7
        %v569 = vsub.s32 %v566, %v568
        %v570 = vrot.slane %v557, %v569
        %v571 = vadd.s32 %v566, 4294967288
        %v572 = vlaneseq
        %v573 = vshrl.u32 %v572, 7
        %v574 = vsub.s32 %v571, %v573
        %v575 = vrot.slane %v558, %v574
        %vm576 = vcmask 130112
        %v577 = vsel %vm576, %v575, %v570
        %v578 = vadd.s32 %v566, 4294967280
        %v579 = vlaneseq
        %v580 = vshrl.u32 %v579, 7
        %v581 = vsub.s32 %v578, %v580
        %v582 = vrot.slane %v559, %v581
        %vm583 = vcmask 195712
        %v584 = vsel %vm583, %v582, %v577
        %v585 = vadd.s32 %v566, 4294967272
        %v586 = vlaneseq
        %v587 = vshrl.u32 %v586, 7
        %v588 = vsub.s32 %v585, %v587
        %v589 = vrot.slane %v560, %v588
        %vm590 = vcmask 261312
        %v591 = vsel %vm590, %v589, %v584
        %vm593 = vcmask 253952
        %594 = vst.msk [vmem:[%s272] sm:$0x1] %vm593, %v591
        %s595 = sand.u32 %s182, 1
        %s596 = scalar_lea.sflag [#allocation4], %s595
        %s597 = sand.u32 %s182, 1
        %s598 = scalar_lea.vmem [#allocation3], %s597
        // Predicated region
        $region49: #{tpu_custom_call.1} parent=47 // pred_check
          %p599 = pneg %p192
        $region50: #{tpu_custom_call.1} parent=47 // pred_check_branch
          %601 = sbr.rel (%p599) target = $region52
        $region51: #{tpu_custom_call.1} parent=47 // pred_region
          %s603 = ssub.s32 16, 16
          %604 = vsyncadd %s596, %s603
          %s605 = smul.addr %s22, 16
          %s606 = scalar_lea.hbm %s7, %s605
          %s608 = sshll.u32 %s598, 4
          %s609 = int_to_ptr.vmem [resolvable:$true] %s608
          %611 = dma.vmem_to_hbm [thread:$0]  %s609, 16, %s606, %s596
        $region52: #{tpu_custom_call.1} parent=47 // pred_fallthru
          _
      $region48: #{tpu_custom_call.1} parent=5 // pred_fallthru
        _
      %p612 = scmp.le.s32.totalorder 2, %s17
      // Predicated region
      $region53: #{tpu_custom_call.1} parent=5 // pred_check
        %p613 = pneg %p612
      $region54: #{tpu_custom_call.1} parent=5 // pred_check_branch
        %615 = sbr.rel (%p613) target = $region56
      $region55: #{tpu_custom_call.1} parent=5 // pred_region
        %s616 = ssub.s32 %s17, 2
        // Predicated region
        $region57: #{tpu_custom_call.1} parent=55 // pred_check
          %p617 = pneg %p198
        $region58: #{tpu_custom_call.1} parent=55 // pred_check_branch
          %619 = sbr.rel (%p617) target = $region60
        $region59: #{tpu_custom_call.1} parent=55 // pred_region
          %s620 = sand.u32 %s183, 1
          %s621 = scalar_lea.sflag [#allocation4], %s620
          %s622 = sand.u32 %s183, 1
          %s623 = scalar_lea.vmem [#allocation3], %s622
          %624 = dma.done %s621, 16
        $region60: #{tpu_custom_call.1} parent=55 // pred_fallthru
          _
      $region56: #{tpu_custom_call.1} parent=5 // pred_fallthru
        _
    $region6: #{tpu_custom_call.1} parent=1 // loop_footer
      %s21 = sadd.s32 1, %s17
    $region7: #{tpu_custom_call.1} parent=1 // loop_footer_branch
      %16 = sbr.rel target = $region3
    $region8: #{tpu_custom_call.1} parent=1 // loop_exit
      _
    %625 = vsyncpa [#allocation4], 1
    %s626 = scalar_lea.sflag [#allocation4], 1
    %627 = vsyncpa %s626, 1

</llo_original>
